<compile_context>
chip_gen: v7x
topology: tpu7x:2x2x1
jax: 0.10.0
libtpu: 0.0.40
codegen_flags: <defaults>
</compile_context>

<pallas_src>
import jax
import jax.numpy as jnp
from jax import lax
from jax.experimental import pallas as pl
from jax.experimental.pallas import tpu as pltpu


# ---------------------------------------------------------------------------
# Kernels
# ---------------------------------------------------------------------------
def distmult_kernel(h_ref, w_ref, out_ref):
    """Float weight stream: (B, D) x (tn, D) contracted on D -> (B, tn)."""
    h = h_ref[...]
    w = w_ref[...]
    if w.dtype != h.dtype:          # e.g. fp8 table on v7x -> bf16 compute dtype
        w = w.astype(h.dtype)
    logits = lax.dot_general(
        h, w,
        dimension_numbers=(((1,), (1,)), ((), ())),
        preferred_element_type=jnp.float32,
    )
    out_ref[...] = jax.nn.sigmoid(logits).astype(out_ref.dtype)


def distmult_int8_kernel(h_ref, wq_ref, scale_ref, out_ref):
    """int8 weight stream with per-row scales (v5e / v6e).

    The int8->f32 convert is VPU work (free slack while HBM-bound); the per-row
    scale is applied to the logits after the dot (one mul per output element
    instead of per weight element)."""
    w = wq_ref[...].astype(jnp.float32)
    logits = lax.dot_general(
        h_ref[...], w,
        dimension_numbers=(((1,), (1,)), ((), ())),
        preferred_element_type=jnp.float32,
    )
    out_ref[...] = jax.nn.sigmoid(logits * scale_ref[...]).astype(out_ref.dtype)


# ---------------------------------------------------------------------------
# Wrapper
# ---------------------------------------------------------------------------
def distmult_forward(e1_idx, rel_idx, emb_e, emb_rel, *, tn=4096,
                     out_dtype=jnp.float32, w_int8=None, w_scale=None):
    """DistMult forward: sigmoid((emb_e[e1] * emb_rel[rel]) @ emb_e.T).

    emb_e may be f32 / bf16 / fp8 (the streamed tile is cast to the compute
    dtype in-kernel).  Alternatively pass (w_int8, w_scale): an int8-quantized
    copy of the entity table with per-row f32 scales of shape (1, E), to halve
    the dominant HBM weight stream on v5e / v6e.
    """
    # --- glue: embedding lookup + squeeze (matches torch .squeeze()) ---
    e1_emb = jnp.squeeze(emb_e[e1_idx], axis=1)       # (B, D)
    rel_emb = jnp.squeeze(emb_rel[rel_idx], axis=1)   # (B, D)
    # TODO(synk): input dropout (self.inp_drop) is identity at inference; not modeled.

    E, D = emb_e.shape
    use_int8 = w_int8 is not None

    # Compute dtype for the resident h and the MXU inputs.
    if use_int8 or emb_e.dtype == jnp.float32:
        compute_dt = jnp.float32
    else:
        compute_dt = jnp.bfloat16       # bf16 / fp8 tables -> bf16 MXU inputs
    h = (e1_emb.astype(jnp.float32) * rel_emb.astype(jnp.float32)).astype(compute_dt)
    B = h.shape[0]

    # Entity tile: full table when it fits one tile, else lane-aligned tiles.
    # The last tile may be ragged; Pallas masks the out-of-bounds output columns.
    if E <= tn:
        tn_eff, num_tiles = E, 1
    else:
        tn_eff = (tn // 128) * 128 or 128
        num_tiles = pl.cdiv(E, tn_eff)

    w_stream = w_int8 if use_int8 else emb_e
    w_bytes = jnp.dtype(w_stream.dtype).itemsize
    out_bytes = jnp.dtype(out_dtype).itemsize
    h_bytes = jnp.dtype(h.dtype).itemsize

    # Scheduler hint: this is an HBM-bound streaming matmul.
    bytes_accessed = (E * D * w_bytes + B * E * out_bytes + B * D * h_bytes
                      + (E * 4 if use_int8 else 0))
    cost = pl.CostEstimate(flops=2 * B * D * E, transcendentals=B * E,
                           bytes_accessed=bytes_accessed)

    # Only raise the scoped-VMEM limit when the double-buffered tile budget
    # would exceed the conservative v5e default.
    est_vmem = (2 * tn_eff * D * w_bytes        # double-buffered weight tiles
                + 2 * B * tn_eff * out_bytes    # double-buffered output tiles
                + B * D * h_bytes               # resident h
                + (2 * tn_eff * 4 if use_int8 else 0))
    vmem_limit = None
    if est_vmem > (12 << 20):
        vmem_limit = min(int(est_vmem) + (8 << 20), 100 << 20)

    if use_int8:
        kernel = distmult_int8_kernel
        in_specs = [
            pl.BlockSpec((B, D), lambda j: (0, 0)),          # resident h
            pl.BlockSpec((tn_eff, D), lambda j: (j, 0)),     # streaming int8 rows
            pl.BlockSpec((1, tn_eff), lambda j: (0, j)),     # per-row scales
        ]
        operands = (h, w_int8, w_scale)
    else:
        kernel = distmult_kernel
        in_specs = [
            pl.BlockSpec((B, D), lambda j: (0, 0)),          # resident h
            pl.BlockSpec((tn_eff, D), lambda j: (j, 0)),     # streaming table rows
        ]
        operands = (h, emb_e)

    out = pl.pallas_call(
        kernel,
        out_shape=jax.ShapeDtypeStruct((B, E), out_dtype),
        grid_spec=pltpu.PrefetchScalarGridSpec(
            num_scalar_prefetch=0,
            grid=(num_tiles,),
            in_specs=in_specs,
            out_specs=pl.BlockSpec((B, tn_eff), lambda j: (0, j)),
        ),
        compiler_params=pltpu.CompilerParams(
            dimension_semantics=("parallel",),   # megacore splits entity tiles
            vmem_limit_bytes=vmem_limit,
        ),
        cost_estimate=cost,
    )(*operands)

    return out                                   # (B, E) -- no trailing slice


# ---------------------------------------------------------------------------
# Helpers
# ---------------------------------------------------------------------------
def xavier_normal(key, shape):
    fan_out, fan_in = shape
    std = (2.0 / (fan_in + fan_out)) ** 0.5
    return std * jax.random.normal(key, shape, dtype=jnp.float32)


def quantize_rows_int8(w):
    """Per-row symmetric int8 quantization of the entity table."""
    amax = jnp.max(jnp.abs(w), axis=1, keepdims=True)               # (E, 1)
    scale = jnp.where(amax > 0, amax / 127.0, 1.0).astype(jnp.float32)
    w_q = jnp.clip(jnp.round(w / scale), -127, 127).astype(jnp.int8)
    return w_q, scale.reshape(1, -1)                                 # (E, D), (1, E)


# ---------------------------------------------------------------------------
# Demo / checks
# ---------------------------------------------------------------------------
if __name__ == "__main__":
    num_entities = 1000      # intentionally NOT a multiple of the tile size
    num_relations = 32
    embedding_dim = 128
    batch = 8                # multiple of 8 -> unmasked sublane stores (f32)

    key = jax.random.PRNGKey(0)
    k_e, k_r, k_i1, k_i2 = jax.random.split(key, 4)

    emb_e = xavier_normal(k_e, (num_entities, embedding_dim))
    emb_rel = xavier_normal(k_r, (num_relations, embedding_dim))
    # padding_idx=0 rows are zero (as in torch.nn.Embedding(padding_idx=0)).
    emb_e = emb_e.at[0].set(0.0)
    emb_rel = emb_rel.at[0].set(0.0)

    # Indices shaped (B, 1), as the torch forward's .squeeze() implies.
    e1_idx = jax.random.randint(k_i1, (batch, 1), 0, num_entities)
    rel_idx = jax.random.randint(k_i2, (batch, 1), 0, num_relations)

    # Plain-JAX reference (same math as the torch module).
    e1_ref = jnp.squeeze(emb_e[e1_idx], axis=1)
    rel_ref = jnp.squeeze(emb_rel[rel_idx], axis=1)
    ref = jax.nn.sigmoid((e1_ref * rel_ref) @ emb_e.T)

    # --- f32 weights, single full-table tile (E <= default tn): strict check ---
    pred = jax.block_until_ready(distmult_forward(e1_idx, rel_idx, emb_e, emb_rel))
    assert pred.shape == (batch, num_entities)
    assert jnp.allclose(pred, ref, atol=1e-5, rtol=1e-5)

    # --- f32 weights, tn=256: exercises multi-tile grid + ragged last block ---
    pred_t = jax.block_until_ready(
        distmult_forward(e1_idx, rel_idx, emb_e, emb_rel, tn=256))
    assert pred_t.shape == (batch, num_entities)
    assert jnp.allclose(pred_t, ref, atol=1e-5, rtol=1e-5)

    # --- bf16 weight stream (caller holds the table in bf16): loose check ---
    pred_bf16 = jax.block_until_ready(
        distmult_forward(e1_idx, rel_idx, emb_e.astype(jnp.bfloat16),
                         emb_rel.astype(jnp.bfloat16), tn=256))
    assert pred_bf16.shape == (batch, num_entities)
    assert jnp.allclose(pred_bf16, ref, atol=2e-2, rtol=2e-2)

    # --- int8 weight stream with per-row scales (v5e / v6e): loose check ---
    w_q, w_scale = quantize_rows_int8(emb_e)
    pred_i8 = jax.block_until_ready(
        distmult_forward(e1_idx, rel_idx, emb_e, emb_rel, tn=256,
                         w_int8=w_q, w_scale=w_scale))
    assert pred_i8.shape == (batch, num_entities)
    assert jnp.allclose(pred_i8, ref, atol=5e-3, rtol=5e-3)

    print("KERNEL_OK")
</pallas_src>

<mosaic_0001>
module attributes {stable_mosaic.version = 11 : i64} {
  func.func @distmult_kernel(%arg0: i32, %arg1: memref<8x128xf32, #tpu.memory_space<vmem>>, %arg2: memref<1000x128xf32, #tpu.memory_space<vmem>>, %arg3: memref<8x1000xf32, #tpu.memory_space<vmem>>) attributes {dimension_semantics = [#tpu.dimension_semantics<parallel>], iteration_bounds = array<i64: 1>, scalar_prefetch = 0 : i64, scratch_operands = 0 : i64, tpu.core_type = #tpu.core_type<tc>, window_params = [{pipeline_mode = #tpu.pipeline_mode<synchronous>, transform_indices = @transform_0, window_bounds = array<i64: 8, 128>}, {transform_indices = @transform_1, window_bounds = array<i64: 1000, 128>}, {transform_indices = @transform_2, window_bounds = array<i64: 8, 1000>}]} {
    %c0 = arith.constant 0 : index
    %c0_0 = arith.constant 0 : index
    %0 = vector.load %arg1[%c0, %c0_0] : memref<8x128xf32, #tpu.memory_space<vmem>>, vector<8x128xf32>
    %c0_1 = arith.constant 0 : index
    %c0_2 = arith.constant 0 : index
    %1 = vector.load %arg2[%c0_1, %c0_2] : memref<1000x128xf32, #tpu.memory_space<vmem>>, vector<1000x128xf32>
    %cst = arith.constant dense<0.000000e+00> : vector<8x1000xf32>
    %2 = tpu.matmul %0, %1, %cst {dimension_numbers = #tpu.dot_dimension_numbers<[1], [1], [0], [0], [0, 0, 1, 0], [], []>} : vector<8x128xf32>, vector<1000x128xf32>, vector<8x1000xf32> -> vector<8x1000xf32>
    %3 = arith.negf %2 : vector<8x1000xf32>
    %4 = math.exp %3 : vector<8x1000xf32>
    %cst_3 = arith.constant 1.000000e+00 : f32
    %5 = vector.broadcast %cst_3 : f32 to vector<8x1000xf32>
    %6 = arith.addf %5, %4 : vector<8x1000xf32>
    %7 = arith.divf %5, %6 : vector<8x1000xf32>
    %c0_4 = arith.constant 0 : index
    %c0_5 = arith.constant 0 : index
    %8 = vector.load %arg3[%c0_4, %c0_5] : memref<8x1000xf32, #tpu.memory_space<vmem>>, vector<8x1000xf32>
    tpu.vector_store %arg3[%c0_4, %c0_5], %7 {strides = array<i32>} : memref<8x1000xf32, #tpu.memory_space<vmem>>, vector<8x1000xf32>,
    return
  }
  func.func @transform_0(%arg0: i32) -> (i32, i32) {
    %c0_i32 = arith.constant 0 : i32
    %c0_i32_0 = arith.constant 0 : i32
    %c0_i32_1 = arith.constant 0 : i32
    return %c0_i32, %c0_i32_0 : i32, i32
  }
  func.func @transform_1(%arg0: i32) -> (i32, i32) {
    %c0_i32 = arith.constant 0 : i32
    %c0_i32_0 = arith.constant 0 : i32
    return %arg0, %c0_i32 : i32, i32
  }
  func.func @transform_2(%arg0: i32) -> (i32, i32) {
    %c0_i32 = arith.constant 0 : i32
    %c0_i32_0 = arith.constant 0 : i32
    return %c0_i32, %arg0 : i32, i32
  }
}

</mosaic_0001>

<llo_original>
// kernel: tpu_custom_call.1
$region0: #{tpu_custom_call.1}
  #allocation0 [shape = 'u32[]', space=smem, size = 0x4, offset = 0x4, fixed_abs, tag = 'smem constant byte address 0x4 - core index']
  #allocation1 [shape = 'u32[144,128]{1,0:T(1,128)}', space=vmem, size = 0x12000, scoped, tag = 'internal scratch']
  %s0 = inlined_call_operand.hbm [shape: f32[8,128], index: 0, kind: input, shape index: {}]
  %s1 = inlined_call_operand.hbm [shape: f32[1000,128], index: 1, kind: input, shape index: {}]
  %s2 = inlined_call_operand.hbm [shape: f32[8,1000], index: 2, kind: output, shape index: {}]
  %s3 = sld [smem:[#allocation0]]
  $region26: #{tpu_custom_call.1} parent=0
    _
  %s5 = ssub.s32 1, %s3
  %s6 = scalar_select 0, %s5, %s3
  $region1: #{tpu_custom_call.1} parent=0
    #allocation2 [shape = 'u8[4096]{0}', space=vmem, size = 0x1000, scoped, tag = 'input window, operand 0, single buffered']
    #allocation3 [shape = 's32[1]{0}', space=sflag, size = 0x4, scoped, tag = 'scoped memory for tpu_custom_call.1']
    #allocation4 [shape = 's32[1]{0}', space=sflag, size = 0x4, scoped, tag = 'scoped memory for tpu_custom_call.1']
    #allocation5 [shape = 'u8[512000]{0}', space=vmem, size = 0x7d000, scoped, tag = 'input window, operand 1, single buffered']
    #allocation6 [shape = 's32[1]{0}', space=sflag, size = 0x4, scoped, tag = 'scoped memory for tpu_custom_call.1']
    #allocation7 [shape = 'u8[32768]{0}', space=vmem, size = 0x8000, scoped, tag = 'output window, operand 0, single buffered']
    %7 = vsyncpa [#allocation3], 0
    %8 = vsyncpa [#allocation6], 0
    %9 = vsyncpa [#allocation4], 0
    // Predicated region
    $region2: #{tpu_custom_call.1} parent=1 // pred_check
      _
    $region3: #{tpu_custom_call.1} parent=1 // pred_check_branch
      %11 = sbr.rel (0) target = $region5
    $region4: #{tpu_custom_call.1} parent=1 // pred_region
      %s13 = ssub.s32 128, 128
      %14 = vsyncadd [#allocation3], %s13
      %s16 = sshll.u32 [#allocation2], 4
      %s17 = int_to_ptr.vmem [resolvable:$true] %s16
      %19 = dma.hbm_to_vmem [thread:$0]  %s0, 128, %s17, [#allocation3]
    $region5: #{tpu_custom_call.1} parent=1 // pred_fallthru
      _
    // Predicated region
    $region6: #{tpu_custom_call.1} parent=1 // pred_check
      _
    $region7: #{tpu_custom_call.1} parent=1 // pred_check_branch
      %21 = sbr.rel (0) target = $region9
    $region8: #{tpu_custom_call.1} parent=1 // pred_region
      %s23 = ssub.s32 16000, 16000
      %24 = vsyncadd [#allocation6], %s23
      %s25 = sshll.u32 [#allocation5], 4
      %s26 = int_to_ptr.vmem [resolvable:$true] %s25
      %31 = dma.hbm_to_vmem [thread:$0]  %s1, 16000, %s26, [#allocation6], 128, 128, 8
    $region9: #{tpu_custom_call.1} parent=1 // pred_fallthru
      _
    // Predicated region
    $region10: #{tpu_custom_call.1} parent=1 // pred_check
      _
    $region11: #{tpu_custom_call.1} parent=1 // pred_check_branch
      %33 = sbr.rel (0) target = $region13
    $region12: #{tpu_custom_call.1} parent=1 // pred_region
      %34 = dma.done [#allocation3], 128
    $region13: #{tpu_custom_call.1} parent=1 // pred_fallthru
      _
    // Predicated region
    $region14: #{tpu_custom_call.1} parent=1 // pred_check
      _
    $region15: #{tpu_custom_call.1} parent=1 // pred_check_branch
      %36 = sbr.rel (0) target = $region17
    $region16: #{tpu_custom_call.1} parent=1 // pred_region
      %37 = dma.done [#allocation6], 16000
    $region17: #{tpu_custom_call.1} parent=1 // pred_fallthru
      _
    %v38 = vld [vmem:[#allocation2] sm:$0xff]
    %v39 = vld [vmem:[#allocation5] sm:$0xff]
    %v40 = vld [vmem:[#allocation5 + $0x8] sm:$0xff]
    %v41 = vld [vmem:[#allocation5 + $0x10] sm:$0xff]
    %v42 = vld [vmem:[#allocation5 + $0x18] sm:$0xff]
    %v43 = vld [vmem:[#allocation5 + $0x20] sm:$0xff]
    %v44 = vld [vmem:[#allocation5 + $0x28] sm:$0xff]
    %v45 = vld [vmem:[#allocation5 + $0x30] sm:$0xff]
    %v46 = vld [vmem:[#allocation5 + $0x38] sm:$0xff]
    %v47 = vld [vmem:[#allocation5 + $0x40] sm:$0xff]
    %v48 = vld [vmem:[#allocation5 + $0x48] sm:$0xff]
    %v49 = vld [vmem:[#allocation5 + $0x50] sm:$0xff]
    %v50 = vld [vmem:[#allocation5 + $0x58] sm:$0xff]
    %v51 = vld [vmem:[#allocation5 + $0x60] sm:$0xff]
    %v52 = vld [vmem:[#allocation5 + $0x68] sm:$0xff]
    %v53 = vld [vmem:[#allocation5 + $0x70] sm:$0xff]
    %v54 = vld [vmem:[#allocation5 + $0x78] sm:$0xff]
    %v55 = vld [vmem:[#allocation5 + $0x80] sm:$0xff]
    %v56 = vld [vmem:[#allocation5 + $0x88] sm:$0xff]
    %v57 = vld [vmem:[#allocation5 + $0x90] sm:$0xff]
    %v58 = vld [vmem:[#allocation5 + $0x98] sm:$0xff]
    %v59 = vld [vmem:[#allocation5 + $0xa0] sm:$0xff]
    %v60 = vld [vmem:[#allocation5 + $0xa8] sm:$0xff]
    %v61 = vld [vmem:[#allocation5 + $0xb0] sm:$0xff]
    %v62 = vld [vmem:[#allocation5 + $0xb8] sm:$0xff]
    %v63 = vld [vmem:[#allocation5 + $0xc0] sm:$0xff]
    %v64 = vld [vmem:[#allocation5 + $0xc8] sm:$0xff]
    %v65 = vld [vmem:[#allocation5 + $0xd0] sm:$0xff]
    %v66 = vld [vmem:[#allocation5 + $0xd8] sm:$0xff]
    %v67 = vld [vmem:[#allocation5 + $0xe0] sm:$0xff]
    %v68 = vld [vmem:[#allocation5 + $0xe8] sm:$0xff]
    %v69 = vld [vmem:[#allocation5 + $0xf0] sm:$0xff]
    %v70 = vld [vmem:[#allocation5 + $0xf8] sm:$0xff]
    %v71 = vld [vmem:[#allocation5 + $0x100] sm:$0xff]
    %v72 = vld [vmem:[#allocation5 + $0x108] sm:$0xff]
    %v73 = vld [vmem:[#allocation5 + $0x110] sm:$0xff]
    %v74 = vld [vmem:[#allocation5 + $0x118] sm:$0xff]
    %v75 = vld [vmem:[#allocation5 + $0x120] sm:$0xff]
    %v76 = vld [vmem:[#allocation5 + $0x128] sm:$0xff]
    %v77 = vld [vmem:[#allocation5 + $0x130] sm:$0xff]
    %v78 = vld [vmem:[#allocation5 + $0x138] sm:$0xff]
    %v79 = vld [vmem:[#allocation5 + $0x140] sm:$0xff]
    %v80 = vld [vmem:[#allocation5 + $0x148] sm:$0xff]
    %v81 = vld [vmem:[#allocation5 + $0x150] sm:$0xff]
    %v82 = vld [vmem:[#allocation5 + $0x158] sm:$0xff]
    %v83 = vld [vmem:[#allocation5 + $0x160] sm:$0xff]
    %v84 = vld [vmem:[#allocation5 + $0x168] sm:$0xff]
    %v85 = vld [vmem:[#allocation5 + $0x170] sm:$0xff]
    %v86 = vld [vmem:[#allocation5 + $0x178] sm:$0xff]
    %v87 = vld [vmem:[#allocation5 + $0x180] sm:$0xff]
    %v88 = vld [vmem:[#allocation5 + $0x188] sm:$0xff]
    %v89 = vld [vmem:[#allocation5 + $0x190] sm:$0xff]
    %v90 = vld [vmem:[#allocation5 + $0x198] sm:$0xff]
    %v91 = vld [vmem:[#allocation5 + $0x1a0] sm:$0xff]
    %v92 = vld [vmem:[#allocation5 + $0x1a8] sm:$0xff]
    %v93 = vld [vmem:[#allocation5 + $0x1b0] sm:$0xff]
    %v94 = vld [vmem:[#allocation5 + $0x1b8] sm:$0xff]
    %v95 = vld [vmem:[#allocation5 + $0x1c0] sm:$0xff]
    %v96 = vld [vmem:[#allocation5 + $0x1c8] sm:$0xff]
    %v97 = vld [vmem:[#allocation5 + $0x1d0] sm:$0xff]
    %v98 = vld [vmem:[#allocation5 + $0x1d8] sm:$0xff]
    %v99 = vld [vmem:[#allocation5 + $0x1e0] sm:$0xff]
    %v100 = vld [vmem:[#allocation5 + $0x1e8] sm:$0xff]
    %v101 = vld [vmem:[#allocation5 + $0x1f0] sm:$0xff]
    %v102 = vld [vmem:[#allocation5 + $0x1f8] sm:$0xff]
    %v103 = vld [vmem:[#allocation5 + $0x200] sm:$0xff]
    %v104 = vld [vmem:[#allocation5 + $0x208] sm:$0xff]
    %v105 = vld [vmem:[#allocation5 + $0x210] sm:$0xff]
    %v106 = vld [vmem:[#allocation5 + $0x218] sm:$0xff]
    %v107 = vld [vmem:[#allocation5 + $0x220] sm:$0xff]
    %v108 = vld [vmem:[#allocation5 + $0x228] sm:$0xff]
    %v109 = vld [vmem:[#allocation5 + $0x230] sm:$0xff]
    %v110 = vld [vmem:[#allocation5 + $0x238] sm:$0xff]
    %v111 = vld [vmem:[#allocation5 + $0x240] sm:$0xff]
    %v112 = vld [vmem:[#allocation5 + $0x248] sm:$0xff]
    %v113 = vld [vmem:[#allocation5 + $0x250] sm:$0xff]
    %v114 = vld [vmem:[#allocation5 + $0x258] sm:$0xff]
    %v115 = vld [vmem:[#allocation5 + $0x260] sm:$0xff]
    %v116 = vld [vmem:[#allocation5 + $0x268] sm:$0xff]
    %v117 = vld [vmem:[#allocation5 + $0x270] sm:$0xff]
    %v118 = vld [vmem:[#allocation5 + $0x278] sm:$0xff]
    %v119 = vld [vmem:[#allocation5 + $0x280] sm:$0xff]
    %v120 = vld [vmem:[#allocation5 + $0x288] sm:$0xff]
    %v121 = vld [vmem:[#allocation5 + $0x290] sm:$0xff]
    %v122 = vld [vmem:[#allocation5 + $0x298] sm:$0xff]
    %v123 = vld [vmem:[#allocation5 + $0x2a0] sm:$0xff]
    %v124 = vld [vmem:[#allocation5 + $0x2a8] sm:$0xff]
    %v125 = vld [vmem:[#allocation5 + $0x2b0] sm:$0xff]
    %v126 = vld [vmem:[#allocation5 + $0x2b8] sm:$0xff]
    %v127 = vld [vmem:[#allocation5 + $0x2c0] sm:$0xff]
    %v128 = vld [vmem:[#allocation5 + $0x2c8] sm:$0xff]
    %v129 = vld [vmem:[#allocation5 + $0x2d0] sm:$0xff]
    %v130 = vld [vmem:[#allocation5 + $0x2d8] sm:$0xff]
    %v131 = vld [vmem:[#allocation5 + $0x2e0] sm:$0xff]
    %v132 = vld [vmem:[#allocation5 + $0x2e8] sm:$0xff]
    %v133 = vld [vmem:[#allocation5 + $0x2f0] sm:$0xff]
    %v134 = vld [vmem:[#allocation5 + $0x2f8] sm:$0xff]
    %v135 = vld [vmem:[#allocation5 + $0x300] sm:$0xff]
    %v136 = vld [vmem:[#allocation5 + $0x308] sm:$0xff]
    %v137 = vld [vmem:[#allocation5 + $0x310] sm:$0xff]
    %v138 = vld [vmem:[#allocation5 + $0x318] sm:$0xff]
    %v139 = vld [vmem:[#allocation5 + $0x320] sm:$0xff]
    %v140 = vld [vmem:[#allocation5 + $0x328] sm:$0xff]
    %v141 = vld [vmem:[#allocation5 + $0x330] sm:$0xff]
    %v142 = vld [vmem:[#allocation5 + $0x338] sm:$0xff]
    %v143 = vld [vmem:[#allocation5 + $0x340] sm:$0xff]
    %v144 = vld [vmem:[#allocation5 + $0x348] sm:$0xff]
    %v145 = vld [vmem:[#allocation5 + $0x350] sm:$0xff]
    %v146 = vld [vmem:[#allocation5 + $0x358] sm:$0xff]
    %v147 = vld [vmem:[#allocation5 + $0x360] sm:$0xff]
    %v148 = vld [vmem:[#allocation5 + $0x368] sm:$0xff]
    %v149 = vld [vmem:[#allocation5 + $0x370] sm:$0xff]
    %v150 = vld [vmem:[#allocation5 + $0x378] sm:$0xff]
    %v151 = vld [vmem:[#allocation5 + $0x380] sm:$0xff]
    %v152 = vld [vmem:[#allocation5 + $0x388] sm:$0xff]
    %v153 = vld [vmem:[#allocation5 + $0x390] sm:$0xff]
    %v154 = vld [vmem:[#allocation5 + $0x398] sm:$0xff]
    %v155 = vld [vmem:[#allocation5 + $0x3a0] sm:$0xff]
    %v156 = vld [vmem:[#allocation5 + $0x3a8] sm:$0xff]
    %v157 = vld [vmem:[#allocation5 + $0x3b0] sm:$0xff]
    %v158 = vld [vmem:[#allocation5 + $0x3b8] sm:$0xff]
    %v159 = vld [vmem:[#allocation5 + $0x3c0] sm:$0xff]
    %v160 = vld [vmem:[#allocation5 + $0x3c8] sm:$0xff]
    %v161 = vld [vmem:[#allocation5 + $0x3d0] sm:$0xff]
    %v162 = vld [vmem:[#allocation5 + $0x3d8] sm:$0xff]
    %v163 = vld [vmem:[#allocation5 + $0x3e0] sm:$0xff]
    %164 = vmatprep.subr.mxu0 0.0
    %165 = vmatpush1.xpose.msra.mxu0 %v39
    %166 = vmatprep.subr.mxu0 0.0
    %167 = vmatpush1.xpose.msra.mxu0 %v40
    %168 = vmatprep.subr.mxu0 0.0
    %169 = vmatpush1.xpose.msra.mxu0 %v41
    %170 = vmatprep.subr.mxu0 0.0
    %171 = vmatpush1.xpose.msra.mxu0 %v42
    %172 = vmatprep.subr.mxu0 0.0
    %173 = vmatpush1.xpose.msra.mxu0 %v43
    %174 = vmatprep.subr.mxu0 0.0
    %175 = vmatpush1.xpose.msra.mxu0 %v44
    %176 = vmatprep.subr.mxu0 0.0
    %177 = vmatpush1.xpose.msra.mxu0 %v45
    %178 = vmatprep.subr.mxu0 0.0
    %179 = vmatpush1.xpose.msra.mxu0 %v46
    %180 = vmatprep.subr.mxu0 0.0
    %181 = vmatpush1.xpose.msra.mxu0 %v47
    %182 = vmatprep.subr.mxu0 0.0
    %183 = vmatpush1.xpose.msra.mxu0 %v48
    %184 = vmatprep.subr.mxu0 0.0
    %185 = vmatpush1.xpose.msra.mxu0 %v49
    %186 = vmatprep.subr.mxu0 0.0
    %187 = vmatpush1.xpose.msra.mxu0 %v50
    %188 = vmatprep.subr.mxu0 0.0
    %189 = vmatpush1.xpose.msra.mxu0 %v51
    %190 = vmatprep.subr.mxu0 0.0
    %191 = vmatpush1.xpose.msra.mxu0 %v52
    %192 = vmatprep.subr.mxu0 0.0
    %193 = vmatpush1.xpose.msra.mxu0 %v53
    %194 = vmatprep.subr.mxu0 0.0
    %195 = vmatpush1.xpose.msra.mxu0 %v54
    %196 = vmatprep.subr.mxu0 0.0
    %197 = vmatpush1.xpose.msra.mxu0 %v55
    %198 = vmatprep.subr.mxu0 0.0
    %199 = vmatpush1.xpose.msra.mxu0 %v56
    %200 = vmatprep.subr.mxu0 0.0
    %201 = vmatpush1.xpose.msra.mxu0 %v57
    %202 = vmatprep.subr.mxu0 0.0
    %203 = vmatpush1.xpose.msra.mxu0 %v58
    %204 = vmatprep.subr.mxu0 0.0
    %205 = vmatpush1.xpose.msra.mxu0 %v59
    %206 = vmatprep.subr.mxu0 0.0
    %207 = vmatpush1.xpose.msra.mxu0 %v60
    %208 = vmatprep.subr.mxu0 0.0
    %209 = vmatpush1.xpose.msra.mxu0 %v61
    %210 = vmatprep.subr.mxu0 0.0
    %211 = vmatpush1.xpose.msra.mxu0 %v62
    %212 = vmatprep.subr.mxu0 0.0
    %213 = vmatpush1.xpose.msra.mxu0 %v63
    %214 = vmatprep.subr.mxu0 0.0
    %215 = vmatpush1.xpose.msra.mxu0 %v64
    %216 = vmatprep.subr.mxu0 0.0
    %217 = vmatpush1.xpose.msra.mxu0 %v65
    %218 = vmatprep.subr.mxu0 0.0
    %219 = vmatpush1.xpose.msra.mxu0 %v66
    %220 = vmatprep.subr.mxu0 0.0
    %221 = vmatpush1.xpose.msra.mxu0 %v67
    %222 = vmatprep.subr.mxu0 0.0
    %223 = vmatpush1.xpose.msra.mxu0 %v68
    %224 = vmatprep.subr.mxu0 0.0
    %225 = vmatpush1.xpose.msra.mxu0 %v69
    %226 = vmatprep.subr.mxu0 0.0
    %227 = vmatpush1.xpose.msra.mxu0 %v70
    %228 = vmatprep.mubr.f32.mxu0 0.0
    %229 = vmatmul.mubr.f32.gmra.mrb[0].mxu0 %v38
    %v230 = vpop.f32.mrb[0].mxu0
    %v231 = vadd.f32 0.0, %v230
    %v232 = vpop.f32.mrb[0].mxu0
    %v233 = vadd.f32 0.0, %v232
    %234 = vdwg.mxu0
    %235 = vmatprep.subr.mxu0 0.0
    %236 = vmatpush1.xpose.msra.mxu0 %v71
    %237 = vmatprep.subr.mxu0 0.0
    %238 = vmatpush1.xpose.msra.mxu0 %v72
    %239 = vmatprep.subr.mxu0 0.0
    %240 = vmatpush1.xpose.msra.mxu0 %v73
    %241 = vmatprep.subr.mxu0 0.0
    %242 = vmatpush1.xpose.msra.mxu0 %v74
    %243 = vmatprep.subr.mxu0 0.0
    %244 = vmatpush1.xpose.msra.mxu0 %v75
    %245 = vmatprep.subr.mxu0 0.0
    %246 = vmatpush1.xpose.msra.mxu0 %v76
    %247 = vmatprep.subr.mxu0 0.0
    %248 = vmatpush1.xpose.msra.mxu0 %v77
    %249 = vmatprep.subr.mxu0 0.0
    %250 = vmatpush1.xpose.msra.mxu0 %v78
    %251 = vmatprep.subr.mxu0 0.0
    %252 = vmatpush1.xpose.msra.mxu0 %v79
    %253 = vmatprep.subr.mxu0 0.0
    %254 = vmatpush1.xpose.msra.mxu0 %v80
    %255 = vmatprep.subr.mxu0 0.0
    %256 = vmatpush1.xpose.msra.mxu0 %v81
    %257 = vmatprep.subr.mxu0 0.0
    %258 = vmatpush1.xpose.msra.mxu0 %v82
    %259 = vmatprep.subr.mxu0 0.0
    %260 = vmatpush1.xpose.msra.mxu0 %v83
    %261 = vmatprep.subr.mxu0 0.0
    %262 = vmatpush1.xpose.msra.mxu0 %v84
    %263 = vmatprep.subr.mxu0 0.0
    %264 = vmatpush1.xpose.msra.mxu0 %v85
    %265 = vmatprep.subr.mxu0 0.0
    %266 = vmatpush1.xpose.msra.mxu0 %v86
    %267 = vmatprep.subr.mxu0 0.0
    %268 = vmatpush1.xpose.msra.mxu0 %v87
    %269 = vmatprep.subr.mxu0 0.0
    %270 = vmatpush1.xpose.msra.mxu0 %v88
    %271 = vmatprep.subr.mxu0 0.0
    %272 = vmatpush1.xpose.msra.mxu0 %v89
    %273 = vmatprep.subr.mxu0 0.0
    %274 = vmatpush1.xpose.msra.mxu0 %v90
    %275 = vmatprep.subr.mxu0 0.0
    %276 = vmatpush1.xpose.msra.mxu0 %v91
    %277 = vmatprep.subr.mxu0 0.0
    %278 = vmatpush1.xpose.msra.mxu0 %v92
    %279 = vmatprep.subr.mxu0 0.0
    %280 = vmatpush1.xpose.msra.mxu0 %v93
    %281 = vmatprep.subr.mxu0 0.0
    %282 = vmatpush1.xpose.msra.mxu0 %v94
    %283 = vmatprep.subr.mxu0 0.0
    %284 = vmatpush1.xpose.msra.mxu0 %v95
    %285 = vmatprep.subr.mxu0 0.0
    %286 = vmatpush1.xpose.msra.mxu0 %v96
    %287 = vmatprep.subr.mxu0 0.0
    %288 = vmatpush1.xpose.msra.mxu0 %v97
    %289 = vmatprep.subr.mxu0 0.0
    %290 = vmatpush1.xpose.msra.mxu0 %v98
    %291 = vmatprep.subr.mxu0 0.0
    %292 = vmatpush1.xpose.msra.mxu0 %v99
    %293 = vmatprep.subr.mxu0 0.0
    %294 = vmatpush1.xpose.msra.mxu0 %v100
    %295 = vmatprep.subr.mxu0 0.0
    %296 = vmatpush1.xpose.msra.mxu0 %v101
    %297 = vmatprep.subr.mxu0 0.0
    %298 = vmatpush1.xpose.msra.mxu0 %v102
    %299 = vmatprep.mubr.f32.mxu0 0.0
    %300 = vmatmul.mubr.f32.gmra.mrb[0].mxu0 %v38
    %v301 = vpop.f32.mrb[0].mxu0
    %v302 = vadd.f32 0.0, %v301
    %v303 = vpop.f32.mrb[0].mxu0
    %v304 = vadd.f32 0.0, %v303
    %305 = vdwg.mxu0
    %306 = vmatprep.subr.mxu0 0.0
    %307 = vmatpush1.xpose.msra.mxu0 %v103
    %308 = vmatprep.subr.mxu0 0.0
    %309 = vmatpush1.xpose.msra.mxu0 %v104
    %310 = vmatprep.subr.mxu0 0.0
    %311 = vmatpush1.xpose.msra.mxu0 %v105
    %312 = vmatprep.subr.mxu0 0.0
    %313 = vmatpush1.xpose.msra.mxu0 %v106
    %314 = vmatprep.subr.mxu0 0.0
    %315 = vmatpush1.xpose.msra.mxu0 %v107
    %316 = vmatprep.subr.mxu0 0.0
    %317 = vmatpush1.xpose.msra.mxu0 %v108
    %318 = vmatprep.subr.mxu0 0.0
    %319 = vmatpush1.xpose.msra.mxu0 %v109
    %320 = vmatprep.subr.mxu0 0.0
    %321 = vmatpush1.xpose.msra.mxu0 %v110
    %322 = vmatprep.subr.mxu0 0.0
    %323 = vmatpush1.xpose.msra.mxu0 %v111
    %324 = vmatprep.subr.mxu0 0.0
    %325 = vmatpush1.xpose.msra.mxu0 %v112
    %326 = vmatprep.subr.mxu0 0.0
    %327 = vmatpush1.xpose.msra.mxu0 %v113
    %328 = vmatprep.subr.mxu0 0.0
    %329 = vmatpush1.xpose.msra.mxu0 %v114
    %330 = vmatprep.subr.mxu0 0.0
    %331 = vmatpush1.xpose.msra.mxu0 %v115
    %332 = vmatprep.subr.mxu0 0.0
    %333 = vmatpush1.xpose.msra.mxu0 %v116
    %334 = vmatprep.subr.mxu0 0.0
    %335 = vmatpush1.xpose.msra.mxu0 %v117
    %336 = vmatprep.subr.mxu0 0.0
    %337 = vmatpush1.xpose.msra.mxu0 %v118
    %338 = vmatprep.subr.mxu0 0.0
    %339 = vmatpush1.xpose.msra.mxu0 %v119
    %340 = vmatprep.subr.mxu0 0.0
    %341 = vmatpush1.xpose.msra.mxu0 %v120
    %342 = vmatprep.subr.mxu0 0.0
    %343 = vmatpush1.xpose.msra.mxu0 %v121
    %344 = vmatprep.subr.mxu0 0.0
    %345 = vmatpush1.xpose.msra.mxu0 %v122
    %346 = vmatprep.subr.mxu0 0.0
    %347 = vmatpush1.xpose.msra.mxu0 %v123
    %348 = vmatprep.subr.mxu0 0.0
    %349 = vmatpush1.xpose.msra.mxu0 %v124
    %350 = vmatprep.subr.mxu0 0.0
    %351 = vmatpush1.xpose.msra.mxu0 %v125
    %352 = vmatprep.subr.mxu0 0.0
    %353 = vmatpush1.xpose.msra.mxu0 %v126
    %354 = vmatprep.subr.mxu0 0.0
    %355 = vmatpush1.xpose.msra.mxu0 %v127
    %356 = vmatprep.subr.mxu0 0.0
    %357 = vmatpush1.xpose.msra.mxu0 %v128
    %358 = vmatprep.subr.mxu0 0.0
    %359 = vmatpush1.xpose.msra.mxu0 %v129
    %360 = vmatprep.subr.mxu0 0.0
    %361 = vmatpush1.xpose.msra.mxu0 %v130
    %362 = vmatprep.subr.mxu0 0.0
    %363 = vmatpush1.xpose.msra.mxu0 %v131
    %364 = vmatprep.subr.mxu0 0.0
    %365 = vmatpush1.xpose.msra.mxu0 %v132
    %366 = vmatprep.subr.mxu0 0.0
    %367 = vmatpush1.xpose.msra.mxu0 %v133
    %368 = vmatprep.subr.mxu0 0.0
    %369 = vmatpush1.xpose.msra.mxu0 %v134
    %370 = vmatprep.mubr.f32.mxu0 0.0
    %371 = vmatmul.mubr.f32.gmra.mrb[0].mxu0 %v38
    %v372 = vpop.f32.mrb[0].mxu0
    %v373 = vadd.f32 0.0, %v372
    %v374 = vpop.f32.mrb[0].mxu0
    %v375 = vadd.f32 0.0, %v374
    %376 = vdwg.mxu0
    %377 = vmatprep.subr.mxu0 0.0
    %378 = vmatpush1.xpose.msra.mxu0 %v135
    %379 = vmatprep.subr.mxu0 0.0
    %380 = vmatpush1.xpose.msra.mxu0 %v136
    %381 = vmatprep.subr.mxu0 0.0
    %382 = vmatpush1.xpose.msra.mxu0 %v137
    %383 = vmatprep.subr.mxu0 0.0
    %384 = vmatpush1.xpose.msra.mxu0 %v138
    %385 = vmatprep.subr.mxu0 0.0
    %386 = vmatpush1.xpose.msra.mxu0 %v139
    %387 = vmatprep.subr.mxu0 0.0
    %388 = vmatpush1.xpose.msra.mxu0 %v140
    %389 = vmatprep.subr.mxu0 0.0
    %390 = vmatpush1.xpose.msra.mxu0 %v141
    %391 = vmatprep.subr.mxu0 0.0
    %392 = vmatpush1.xpose.msra.mxu0 %v142
    %393 = vmatprep.subr.mxu0 0.0
    %394 = vmatpush1.xpose.msra.mxu0 %v143
    %395 = vmatprep.subr.mxu0 0.0
    %396 = vmatpush1.xpose.msra.mxu0 %v144
    %397 = vmatprep.subr.mxu0 0.0
    %398 = vmatpush1.xpose.msra.mxu0 %v145
    %399 = vmatprep.subr.mxu0 0.0
    %400 = vmatpush1.xpose.msra.mxu0 %v146
    %401 = vmatprep.subr.mxu0 0.0
    %402 = vmatpush1.xpose.msra.mxu0 %v147
    %403 = vmatprep.subr.mxu0 0.0
    %404 = vmatpush1.xpose.msra.mxu0 %v148
    %405 = vmatprep.subr.mxu0 0.0
    %406 = vmatpush1.xpose.msra.mxu0 %v149
    %407 = vmatprep.subr.mxu0 0.0
    %408 = vmatpush1.xpose.msra.mxu0 %v150
    %409 = vmatprep.subr.mxu0 0.0
    %410 = vmatpush1.xpose.msra.mxu0 %v151
    %411 = vmatprep.subr.mxu0 0.0
    %412 = vmatpush1.xpose.msra.mxu0 %v152
    %413 = vmatprep.subr.mxu0 0.0
    %414 = vmatpush1.xpose.msra.mxu0 %v153
    %415 = vmatprep.subr.mxu0 0.0
    %416 = vmatpush1.xpose.msra.mxu0 %v154
    %417 = vmatprep.subr.mxu0 0.0
    %418 = vmatpush1.xpose.msra.mxu0 %v155
    %419 = vmatprep.subr.mxu0 0.0
    %420 = vmatpush1.xpose.msra.mxu0 %v156
    %421 = vmatprep.subr.mxu0 0.0
    %422 = vmatpush1.xpose.msra.mxu0 %v157
    %423 = vmatprep.subr.mxu0 0.0
    %424 = vmatpush1.xpose.msra.mxu0 %v158
    %425 = vmatprep.subr.mxu0 0.0
    %426 = vmatpush1.xpose.msra.mxu0 %v159
    %427 = vmatprep.subr.mxu0 0.0
    %428 = vmatpush1.xpose.msra.mxu0 %v160
    %429 = vmatprep.subr.mxu0 0.0
    %430 = vmatpush1.xpose.msra.mxu0 %v161
    %431 = vmatprep.subr.mxu0 0.0
    %432 = vmatpush1.xpose.msra.mxu0 %v162
    %433 = vmatprep.subr.mxu0 0.0
    %434 = vmatpush1.xpose.msra.mxu0 %v163
    %435 = vmatprep.subr.mxu0 0.0
    %436 = vmatpush1.xpose.msra.mxu0 0.0
    %437 = vmatprep.subr.mxu0 0.0
    %438 = vmatpush1.xpose.msra.mxu0 0.0
    %439 = vmatprep.subr.mxu0 0.0
    %440 = vmatpush1.xpose.msra.mxu0 0.0
    %441 = vmatprep.mubr.f32.mxu0 0.0
    %442 = vmatmul.mubr.f32.gmra.mrb[0].mxu0 %v38
    %v443 = vpop.f32.mrb[0].mxu0
    %v444 = vadd.f32 0.0, %v443
    %v445 = vpop.f32.mrb[0].mxu0
    %v446 = vadd.f32 0.0, %v445
    %447 = vdwg.mxu0
    %v448 = vxor.u32 %v231, 2147483648
    %v449 = vxor.u32 %v233, 2147483648
    %v450 = vxor.u32 %v302, 2147483648
    %v451 = vxor.u32 %v304, 2147483648
    %v452 = vxor.u32 %v373, 2147483648
    %v453 = vxor.u32 %v375, 2147483648
    %v454 = vxor.u32 %v444, 2147483648
    %v455 = vxor.u32 %v446, 2147483648
    %v456 = vmul.f32 %v448, 1.442695
    %v457 = vpow.pop %v456
    %v458 = vmul.f32 %v449, 1.442695
    %v459 = vpow.pop %v458
    %v460 = vmul.f32 %v450, 1.442695
    %v461 = vpow.pop %v460
    %v462 = vmul.f32 %v451, 1.442695
    %v463 = vpow.pop %v462
    %v464 = vmul.f32 %v452, 1.442695
    %v465 = vpow.pop %v464
    %v466 = vmul.f32 %v453, 1.442695
    %v467 = vpow.pop %v466
    %v468 = vmul.f32 %v454, 1.442695
    %v469 = vpow.pop %v468
    %v470 = vmul.f32 %v455, 1.442695
    %v471 = vpow.pop %v470
    %v472 = vadd.f32 %v457, 1.0
    %v473 = vadd.f32 %v459, 1.0
    %v474 = vadd.f32 %v461, 1.0
    %v475 = vadd.f32 %v463, 1.0
    %v476 = vadd.f32 %v465, 1.0
    %v477 = vadd.f32 %v467, 1.0
    %v478 = vadd.f32 %v469, 1.0
    %v479 = vadd.f32 %v471, 1.0
    %v480 = vrcp.pop %v472
    %v481 = vmul.f32 1.0, %v480
    %v482 = vrcp.pop %v473
    %v483 = vmul.f32 1.0, %v482
    %v484 = vrcp.pop %v474
    %v485 = vmul.f32 1.0, %v484
    %v486 = vrcp.pop %v475
    %v487 = vmul.f32 1.0, %v486
    %v488 = vrcp.pop %v476
    %v489 = vmul.f32 1.0, %v488
    %v490 = vrcp.pop %v477
    %v491 = vmul.f32 1.0, %v490
    %v492 = vrcp.pop %v478
    %v493 = vmul.f32 1.0, %v492
    %v494 = vrcp.pop %v479
    %v495 = vmul.f32 1.0, %v494
    %496 = vst [vmem:[#allocation7] sm:$0xff] %v481
    %497 = vst [vmem:[#allocation7 + $0x8] sm:$0xff] %v483
    %498 = vst [vmem:[#allocation7 + $0x10] sm:$0xff] %v485
    %499 = vst [vmem:[#allocation7 + $0x18] sm:$0xff] %v487
    %500 = vst [vmem:[#allocation7 + $0x20] sm:$0xff] %v489
    %501 = vst [vmem:[#allocation7 + $0x28] sm:$0xff] %v491
    %502 = vst [vmem:[#allocation7 + $0x30] sm:$0xff] %v493
    %vm503 = vcmask 850944
    %504 = vst.msk [vmem:[#allocation7 + $0x38] sm:$0xff] %vm503, %v495
    // Predicated region
    $region18: #{tpu_custom_call.1} parent=1 // pred_check
      _
    $region19: #{tpu_custom_call.1} parent=1 // pred_check_branch
      %506 = sbr.rel (0) target = $region21
    $region20: #{tpu_custom_call.1} parent=1 // pred_region
      %s508 = ssub.s32 1024, 1024
      %509 = vsyncadd [#allocation4], %s508
      %s511 = sshll.u32 [#allocation7], 4
      %s512 = int_to_ptr.vmem [resolvable:$true] %s511
      %514 = dma.vmem_to_hbm [thread:$0]  %s512, 1024, %s2, [#allocation4]
    $region21: #{tpu_custom_call.1} parent=1 // pred_fallthru
      _
    // Predicated region
    $region22: #{tpu_custom_call.1} parent=1 // pred_check
      _
    $region23: #{tpu_custom_call.1} parent=1 // pred_check_branch
      %516 = sbr.rel (0) target = $region25
    $region24: #{tpu_custom_call.1} parent=1 // pred_region
      %517 = dma.done [#allocation4], 1024
    $region25: #{tpu_custom_call.1} parent=1 // pred_fallthru
      _
    %518 = vsyncpa [#allocation3], 1
    %519 = vsyncpa [#allocation6], 1
    %520 = vsyncpa [#allocation4], 1

</llo_original>
